<compile_context>
chip_gen: v7x
topology: tpu7x:2x2x1
jax: 0.10.0
libtpu: 0.0.40
codegen_flags: <defaults>
</compile_context>

<pallas_src>
import jax
import jax.numpy as jnp
from jax.experimental import pallas as pl
from jax.experimental.pallas import tpu as pltpu


def _make_fused_kernel(c_out, k_size, pad):
    """ConvLSTM-chain kernel: full T-unit recurrence in one kernel invocation."""

    def kernel(x_ref, w_ref, b_ref, m_ref, ht_ref, ct_sc):
        # x_ref  : (T, C_in, BWb)        bf16  all units' inputs for this batch block
        # w_ref  : (T, 4*C_out, K*3*C)   bf16  fused [f;i;o;cand] x [tap x (xt;ht;ct)]
        # b_ref  : (T, 4*C_out, 1)       f32   fused biases
        # m_ref  : (K, 1, BWb)           f32   'same'-padding lane masks (loop-invariant)
        # ht_ref : (C_out, BWb)          f32   output ref; doubles as the ht carry
        # ct_sc  : (C_out, BWb)          f32   ct carry (VMEM scratch)
        n_units = x_ref.shape[0]
        bw = ht_ref.shape[-1]

        ht_ref[...] = jnp.zeros_like(ht_ref)
        ct_sc[...] = jnp.zeros_like(ct_sc)

        def step(t, carry):
            # Gate input concat([xt, ht_prev, ct_prev]); assembled in f32 so all
            # sublane concats stay 8-row aligned, then cast to bf16 ONCE per unit.
            xg = jnp.concatenate(
                [x_ref[t].astype(jnp.float32), ht_ref[...], ct_sc[...]], axis=0)

            # Conv1d('same'): stack the K shifted/masked taps along the
            # contraction dim -> a single MXU matmul per unit (no per-tap dots).
            taps = []
            for k in range(k_size):             # static, unrolled taps
                d = k - pad
                if d == 0:
                    taps.append(xg)
                else:
                    taps.append(pltpu.roll(xg, shift=(-d) % bw, axis=1) * m_ref[k])
            xk = jnp.concatenate(taps, axis=0).astype(jnp.bfloat16)   # (K*3C, BWb)

            acc = jnp.dot(w_ref[t], xk,
                          preferred_element_type=jnp.float32) + b_ref[t]

            # sigmoid = 1 / (1 + exp(-z)); exp and the approx reciprocal both run
            # on the EUP slot, keeping the 4-wide VALU free (v5e has no bf16 VPU).
            gates = pl.reciprocal(1.0 + jnp.exp(-acc[:3 * c_out]), approx=True)
            cand = jnp.tanh(acc[3 * c_out:])
            ft = gates[:c_out]
            it = gates[c_out:2 * c_out]
            ot = gates[2 * c_out:]

            ct = ft * ct_sc[...] + it * cand
            ct_sc[...] = ct
            ht_ref[...] = ot * jnp.tanh(ct)      # output ref is the ht carry
            return carry

        jax.lax.fori_loop(0, n_units, step, 0, unroll=True)

    return kernel


@jax.jit
def _network_lstm_predict(x, w_stack, b_stack):
    """x: (B,T,C,W) f32; w_stack: (U,4C,K*3C) bf16; b_stack: (U,4C,1) f32."""
    B, T, C, W = x.shape
    four_c = w_stack.shape[1]
    c_out = four_c // 4
    k3c = w_stack.shape[2]
    K = k3c // (3 * C)
    pad = (K - 1) // 2

    # v7x: split the batch into independent blocks so the "parallel" grid axis
    # can use both TensorCores; on 1-TC chips (v5e/v6e) this is just 2 cheap steps.
    n_blk = 2 if (B >= 2 and B % 2 == 0) else 1
    bb = B // n_blk
    bbw = bb * W

    # (B,T,C,W) -> (n_blk, T, C, bb*W); lanes packed batch-major inside a block.
    x_b = (x.reshape(n_blk, bb, T, C, W)
            .transpose(0, 2, 3, 1, 4)
            .reshape(n_blk, T, C, bbw)
            .astype(jnp.bfloat16))

    w_t = w_stack[:T]          # predict() only runs the first T units
    b_t = b_stack[:T]

    # 'same'-padding masks, hoisted out of the recurrence (depend only on lane%W).
    col = jnp.arange(bbw, dtype=jnp.int32) % W
    masks = jnp.stack(
        [((col + (k - pad) >= 0) & (col + (k - pad) < W)) for k in range(K)],
        axis=0).astype(jnp.float32).reshape(K, 1, bbw)

    # Total VMEM footprint is <0.1 MiB at these shapes; re-derive (and set
    # vmem_limit_bytes) before reusing this residency scheme at larger C/B*W.
    ht_blk = pl.pallas_call(
        _make_fused_kernel(c_out, K, pad),
        out_shape=jax.ShapeDtypeStruct((n_blk, c_out, bbw), jnp.float32),
        grid_spec=pltpu.PrefetchScalarGridSpec(
            num_scalar_prefetch=0,
            grid=(n_blk,),                     # batch blocks only; T loop in-kernel
            in_specs=[
                pl.BlockSpec((None, T, C, bbw), lambda i: (i, 0, 0, 0)),   # x block
                pl.BlockSpec((T, four_c, k3c), lambda i: (0, 0, 0)),       # weights (resident)
                pl.BlockSpec((T, four_c, 1), lambda i: (0, 0, 0)),         # biases (resident)
                pl.BlockSpec((K, 1, bbw), lambda i: (0, 0, 0)),            # masks (resident)
            ],
            out_specs=pl.BlockSpec((None, c_out, bbw), lambda i: (i, 0, 0)),
            scratch_shapes=[pltpu.VMEM((c_out, bbw), jnp.float32)],        # ct carry
        ),
        compiler_params=pltpu.CompilerParams(dimension_semantics=("parallel",)),
    )(x_b, w_t, b_t, masks)

    # (n_blk, C_out, bb*W) -> (B, C_out, W)
    return (ht_blk.reshape(n_blk, c_out, bb, W)
                  .transpose(0, 2, 1, 3)
                  .reshape(B, c_out, W))


class NetworkLSTM:
    """JAX/Pallas port of NetworkLSTM's forward/predict path (no training loop)."""

    def __init__(self, observation_size, in_channels, out_channels, kernel_size, key):
        # NetworkLSTM.__createStructure's channel arithmetic (in + 2*in) only
        # holds when out_channels == in_channels.
        assert out_channels == in_channels
        assert kernel_size % 2 == 1, "odd kernel required for 'same' padding"
        self.len_units = observation_size - 1
        self.in_channels = in_channels
        self.out_channels = out_channels
        self.kernel_size = kernel_size

        C = in_channels
        Co = out_channels
        K = kernel_size
        unit_keys = jax.random.split(key, self.len_units)
        w_stack, b_stack = [], []
        for i in range(self.len_units):
            c_gate = C if i == 0 else 3 * C     # conv input: [xt] or [xt, ht, ct]
            c_cand = C if i == 0 else 2 * C     # candidate conv input: [xt] or [xt, ht]
            kk = jax.random.split(unit_keys[i], 8)

            def w(k, cin):
                bound = 1.0 / (cin * K) ** 0.5
                return jax.random.uniform(k, (K, Co, cin), jnp.float32, -bound, bound)

            def b(k, cin):
                bound = 1.0 / (cin * K) ** 0.5
                return jax.random.uniform(k, (Co, 1), jnp.float32, -bound, bound)

            wf, bf = w(kk[0], c_gate), b(kk[1], c_gate)
            wi, bi = w(kk[2], c_gate), b(kk[3], c_gate)
            wo, bo = w(kk[4], c_gate), b(kk[5], c_gate)
            wc, bc = w(kk[6], c_cand), b(kk[7], c_cand)

            # Fused weight rows [f; i; o; cand], input cols [xt; ht; ct] per tap.
            # Missing input channels are zero-padded — exact since ht=ct=0 at
            # unit 0 and the candidate conv never sees ct.
            wk = jnp.zeros((K, 4 * Co, 3 * C), jnp.float32)
            wk = wk.at[:, 0 * Co:1 * Co, :c_gate].set(wf)
            wk = wk.at[:, 1 * Co:2 * Co, :c_gate].set(wi)
            wk = wk.at[:, 2 * Co:3 * Co, :c_gate].set(wo)
            wk = wk.at[:, 3 * Co:4 * Co, :c_cand].set(wc)
            # Fuse the K taps into the matmul contraction dim (tap-major columns).
            w_stack.append(jnp.transpose(wk, (1, 0, 2)).reshape(4 * Co, K * 3 * C))
            b_stack.append(jnp.concatenate([bf, bi, bo, bc], axis=0))

        self.w_stack = jnp.stack(w_stack).astype(jnp.bfloat16)   # (U, 4C, K*3C)
        self.b_stack = jnp.stack(b_stack)                        # (U, 4C, 1) f32

    def predict(self, x):
        """x: (B, T, C_in, W) with T <= len_units. Returns last unit's ht: (B, C_out, W)."""
        B, T, C, W = x.shape
        assert T <= self.len_units and C == self.in_channels
        return _network_lstm_predict(x, self.w_stack, self.b_stack)


if __name__ == "__main__":
    key = jax.random.PRNGKey(0)
    pkey, xkey = jax.random.split(key)

    observation_size = 5          # -> 4 memory units
    in_channels = out_channels = 8
    kernel_size = 3
    B, T, W = 2, 4, 128           # sequence length T <= len_units

    net = NetworkLSTM(observation_size, in_channels, out_channels, kernel_size, pkey)
    x = jax.random.normal(xkey, (B, T, in_channels, W), jnp.float32)

    ht = net.predict(x)
    jax.block_until_ready(ht)
    assert ht.shape == (B, out_channels, W)
    assert bool(jnp.all(jnp.isfinite(ht)))
    print("KERNEL_OK")
</pallas_src>

<mosaic_0001>
module attributes {stable_mosaic.version = 11 : i64} {
  func.func @kernel(%arg0: i32, %arg1: memref<1x4x8x128xbf16, #tpu.memory_space<vmem>>, %arg2: memref<4x32x72xbf16, #tpu.memory_space<vmem>>, %arg3: memref<4x32x1xf32, #tpu.memory_space<vmem>>, %arg4: memref<3x1x128xf32, #tpu.memory_space<vmem>>, %arg5: memref<1x8x128xf32, #tpu.memory_space<vmem>>, %arg6: memref<8x128xf32, #tpu.memory_space<vmem>>) attributes {dimension_semantics = [#tpu.dimension_semantics<parallel>], iteration_bounds = array<i64: 2>, scalar_prefetch = 0 : i64, scratch_operands = 1 : i64, tpu.core_type = #tpu.core_type<tc>, window_params = [{transform_indices = @transform_0, window_bounds = array<i64: 1, 4, 8, 128>}, {pipeline_mode = #tpu.pipeline_mode<synchronous>, transform_indices = @transform_1, window_bounds = array<i64: 4, 32, 72>}, {pipeline_mode = #tpu.pipeline_mode<synchronous>, transform_indices = @transform_2, window_bounds = array<i64: 4, 32, 1>}, {pipeline_mode = #tpu.pipeline_mode<synchronous>, transform_indices = @transform_3, window_bounds = array<i64: 3, 1, 128>}, {transform_indices = @transform_4, window_bounds = array<i64: 1, 8, 128>}]} {
    %cst = arith.constant 0.000000e+00 : f32
    %0 = vector.broadcast %cst : f32 to vector<8x128xf32>
    %c0 = arith.constant 0 : index
    %c0_0 = arith.constant 0 : index
    %c0_1 = arith.constant 0 : index
    %1 = vector.load %arg5[%c0, %c0_0, %c0_1] : memref<1x8x128xf32, #tpu.memory_space<vmem>>, vector<1x8x128xf32>
    %2 = vector.shape_cast %1 : vector<1x8x128xf32> to vector<8x128xf32>
    %3 = vector.shape_cast %0 : vector<8x128xf32> to vector<1x8x128xf32>
    tpu.vector_store %arg5[%c0, %c0_0, %c0_1], %3 {strides = array<i32>} : memref<1x8x128xf32, #tpu.memory_space<vmem>>, vector<1x8x128xf32>,
    %cst_2 = arith.constant 0.000000e+00 : f32
    %4 = vector.broadcast %cst_2 : f32 to vector<8x128xf32>
    %c0_3 = arith.constant 0 : index
    %c0_4 = arith.constant 0 : index
    %5 = vector.load %arg6[%c0_3, %c0_4] : memref<8x128xf32, #tpu.memory_space<vmem>>, vector<8x128xf32>
    tpu.vector_store %arg6[%c0_3, %c0_4], %4 {strides = array<i32>} : memref<8x128xf32, #tpu.memory_space<vmem>>, vector<8x128xf32>,
    %c0_i32 = arith.constant 0 : i32
    %c0_5 = arith.constant 0 : index
    %6 = arith.index_cast %c0_i32 : i32 to index
    %c0_6 = arith.constant 0 : index
    %c0_7 = arith.constant 0 : index
    %7 = vector.load %arg1[%c0_5, %6, %c0_6, %c0_7] : memref<1x4x8x128xbf16, #tpu.memory_space<vmem>>, vector<1x1x8x128xbf16>
    %8 = vector.shape_cast %7 : vector<1x1x8x128xbf16> to vector<8x128xbf16>
    %9 = arith.extf %8 : vector<8x128xbf16> to vector<8x128xf32>
    %c0_8 = arith.constant 0 : index
    %c0_9 = arith.constant 0 : index
    %c0_10 = arith.constant 0 : index
    %10 = vector.load %arg5[%c0_8, %c0_9, %c0_10] : memref<1x8x128xf32, #tpu.memory_space<vmem>>, vector<1x8x128xf32>
    %11 = vector.shape_cast %10 : vector<1x8x128xf32> to vector<8x128xf32>
    %c0_11 = arith.constant 0 : index
    %c0_12 = arith.constant 0 : index
    %12 = vector.load %arg6[%c0_11, %c0_12] : memref<8x128xf32, #tpu.memory_space<vmem>>, vector<8x128xf32>
    %13 = tpu.concatenate %9, %11, %12 in 0 : vector<8x128xf32>, vector<8x128xf32>, vector<8x128xf32> -> vector<24x128xf32>
    %c1_i32 = arith.constant 1 : i32
    %14 = tpu.dynamic_rotate %13 by %c1_i32 dim 1 : vector<24x128xf32>, i32 -> vector<24x128xf32>
    %c0_13 = arith.constant 0 : index
    %c0_14 = arith.constant 0 : index
    %c0_15 = arith.constant 0 : index
    %15 = vector.load %arg4[%c0_13, %c0_14, %c0_15] : memref<3x1x128xf32, #tpu.memory_space<vmem>>, vector<1x1x128xf32>
    %16 = vector.shape_cast %15 : vector<1x1x128xf32> to vector<1x128xf32>
    %17 = vector.broadcast %16 : vector<1x128xf32> to vector<24x128xf32>
    %18 = arith.mulf %14, %17 : vector<24x128xf32>
    %c127_i32 = arith.constant 127 : i32
    %19 = tpu.dynamic_rotate %13 by %c127_i32 dim 1 : vector<24x128xf32>, i32 -> vector<24x128xf32>
    %c2 = arith.constant 2 : index
    %c0_16 = arith.constant 0 : index
    %c0_17 = arith.constant 0 : index
    %20 = vector.load %arg4[%c2, %c0_16, %c0_17] : memref<3x1x128xf32, #tpu.memory_space<vmem>>, vector<1x1x128xf32>
    %21 = vector.shape_cast %20 : vector<1x1x128xf32> to vector<1x128xf32>
    %22 = vector.broadcast %21 : vector<1x128xf32> to vector<24x128xf32>
    %23 = arith.mulf %19, %22 : vector<24x128xf32>
    %24 = tpu.concatenate %18, %13, %23 in 0 : vector<24x128xf32>, vector<24x128xf32>, vector<24x128xf32> -> vector<72x128xf32>
    %25 = arith.truncf %24 : vector<72x128xf32> to vector<72x128xbf16>
    %26 = arith.index_cast %c0_i32 : i32 to index
    %c0_18 = arith.constant 0 : index
    %c0_19 = arith.constant 0 : index
    %27 = vector.load %arg2[%26, %c0_18, %c0_19] : memref<4x32x72xbf16, #tpu.memory_space<vmem>>, vector<1x32x72xbf16>
    %28 = vector.shape_cast %27 : vector<1x32x72xbf16> to vector<32x72xbf16>
    %cst_20 = arith.constant dense<0.000000e+00> : vector<32x128xf32>
    %29 = tpu.matmul %28, %25, %cst_20 {dimension_numbers = #tpu.dot_dimension_numbers<[1], [0], [0], [1], [0, 0, 1, 1], [], []>} : vector<32x72xbf16>, vector<72x128xbf16>, vector<32x128xf32> -> vector<32x128xf32>
    %30 = arith.index_cast %c0_i32 : i32 to index
    %c0_21 = arith.constant 0 : index
    %c0_22 = arith.constant 0 : index
    %31 = vector.load %arg3[%30, %c0_21, %c0_22] : memref<4x32x1xf32, #tpu.memory_space<vmem>>, vector<1x32x1xf32>
    %32 = vector.shape_cast %31 : vector<1x32x1xf32> to vector<32x1xf32>
    %33 = vector.broadcast %32 : vector<32x1xf32> to vector<32x128xf32>
    %34 = arith.addf %29, %33 : vector<32x128xf32>
    %35 = vector.extract_strided_slice %34 {offsets = [0, 0], sizes = [24, 128], strides = [1, 1]} : vector<32x128xf32> to vector<24x128xf32>
    %cst_23 = arith.constant 0.000000e+00 : f32
    %36 = vector.broadcast %cst_23 : f32 to vector<24x128xf32>
    %37 = arith.subf %36, %35 : vector<24x128xf32>
    %38 = math.exp %37 : vector<24x128xf32>
    %cst_24 = arith.constant 1.000000e+00 : f32
    %39 = vector.broadcast %cst_24 : f32 to vector<24x128xf32>
    %40 = arith.addf %39, %38 : vector<24x128xf32>
    %41 = tpu.reciprocal %40 {approx = true} : vector<24x128xf32> -> vector<24x128xf32>
    %42 = vector.extract_strided_slice %34 {offsets = [24, 0], sizes = [8, 128], strides = [1, 1]} : vector<32x128xf32> to vector<8x128xf32>
    %43 = math.tanh %42 : vector<8x128xf32>
    %44 = vector.extract_strided_slice %41 {offsets = [0, 0], sizes = [8, 128], strides = [1, 1]} : vector<24x128xf32> to vector<8x128xf32>
    %45 = vector.extract_strided_slice %41 {offsets = [8, 0], sizes = [8, 128], strides = [1, 1]} : vector<24x128xf32> to vector<8x128xf32>
    %46 = vector.extract_strided_slice %41 {offsets = [16, 0], sizes = [8, 128], strides = [1, 1]} : vector<24x128xf32> to vector<8x128xf32>
    %c0_25 = arith.constant 0 : index
    %c0_26 = arith.constant 0 : index
    %47 = vector.load %arg6[%c0_25, %c0_26] : memref<8x128xf32, #tpu.memory_space<vmem>>, vector<8x128xf32>
    %48 = arith.mulf %44, %47 : vector<8x128xf32>
    %49 = arith.mulf %45, %43 : vector<8x128xf32>
    %50 = arith.addf %48, %49 : vector<8x128xf32>
    %c0_27 = arith.constant 0 : index
    %c0_28 = arith.constant 0 : index
    %51 = vector.load %arg6[%c0_27, %c0_28] : memref<8x128xf32, #tpu.memory_space<vmem>>, vector<8x128xf32>
    tpu.vector_store %arg6[%c0_27, %c0_28], %50 {strides = array<i32>} : memref<8x128xf32, #tpu.memory_space<vmem>>, vector<8x128xf32>,
    %52 = math.tanh %50 : vector<8x128xf32>
    %53 = arith.mulf %46, %52 : vector<8x128xf32>
    %c0_29 = arith.constant 0 : index
    %c0_30 = arith.constant 0 : index
    %c0_31 = arith.constant 0 : index
    %54 = vector.load %arg5[%c0_29, %c0_30, %c0_31] : memref<1x8x128xf32, #tpu.memory_space<vmem>>, vector<1x8x128xf32>
    %55 = vector.shape_cast %54 : vector<1x8x128xf32> to vector<8x128xf32>
    %56 = vector.shape_cast %53 : vector<8x128xf32> to vector<1x8x128xf32>
    tpu.vector_store %arg5[%c0_29, %c0_30, %c0_31], %56 {strides = array<i32>} : memref<1x8x128xf32, #tpu.memory_space<vmem>>, vector<1x8x128xf32>,
    %c1_i32_32 = arith.constant 1 : i32
    %c0_33 = arith.constant 0 : index
    %57 = arith.index_cast %c1_i32_32 : i32 to index
    %c0_34 = arith.constant 0 : index
    %c0_35 = arith.constant 0 : index
    %58 = vector.load %arg1[%c0_33, %57, %c0_34, %c0_35] : memref<1x4x8x128xbf16, #tpu.memory_space<vmem>>, vector<1x1x8x128xbf16>
    %59 = vector.shape_cast %58 : vector<1x1x8x128xbf16> to vector<8x128xbf16>
    %60 = arith.extf %59 : vector<8x128xbf16> to vector<8x128xf32>
    %c0_36 = arith.constant 0 : index
    %c0_37 = arith.constant 0 : index
    %c0_38 = arith.constant 0 : index
    %61 = vector.load %arg5[%c0_36, %c0_37, %c0_38] : memref<1x8x128xf32, #tpu.memory_space<vmem>>, vector<1x8x128xf32>
    %62 = vector.shape_cast %61 : vector<1x8x128xf32> to vector<8x128xf32>
    %c0_39 = arith.constant 0 : index
    %c0_40 = arith.constant 0 : index
    %63 = vector.load %arg6[%c0_39, %c0_40] : memref<8x128xf32, #tpu.memory_space<vmem>>, vector<8x128xf32>
    %64 = tpu.concatenate %60, %62, %63 in 0 : vector<8x128xf32>, vector<8x128xf32>, vector<8x128xf32> -> vector<24x128xf32>
    %c1_i32_41 = arith.constant 1 : i32
    %65 = tpu.dynamic_rotate %64 by %c1_i32_41 dim 1 : vector<24x128xf32>, i32 -> vector<24x128xf32>
    %c0_42 = arith.constant 0 : index
    %c0_43 = arith.constant 0 : index
    %c0_44 = arith.constant 0 : index
    %66 = vector.load %arg4[%c0_42, %c0_43, %c0_44] : memref<3x1x128xf32, #tpu.memory_space<vmem>>, vector<1x1x128xf32>
    %67 = vector.shape_cast %66 : vector<1x1x128xf32> to vector<1x128xf32>
    %68 = vector.broadcast %67 : vector<1x128xf32> to vector<24x128xf32>
    %69 = arith.mulf %65, %68 : vector<24x128xf32>
    %c127_i32_45 = arith.constant 127 : i32
    %70 = tpu.dynamic_rotate %64 by %c127_i32_45 dim 1 : vector<24x128xf32>, i32 -> vector<24x128xf32>
    %c2_46 = arith.constant 2 : index
    %c0_47 = arith.constant 0 : index
    %c0_48 = arith.constant 0 : index
    %71 = vector.load %arg4[%c2_46, %c0_47, %c0_48] : memref<3x1x128xf32, #tpu.memory_space<vmem>>, vector<1x1x128xf32>
    %72 = vector.shape_cast %71 : vector<1x1x128xf32> to vector<1x128xf32>
    %73 = vector.broadcast %72 : vector<1x128xf32> to vector<24x128xf32>
    %74 = arith.mulf %70, %73 : vector<24x128xf32>
    %75 = tpu.concatenate %69, %64, %74 in 0 : vector<24x128xf32>, vector<24x128xf32>, vector<24x128xf32> -> vector<72x128xf32>
    %76 = arith.truncf %75 : vector<72x128xf32> to vector<72x128xbf16>
    %77 = arith.index_cast %c1_i32_32 : i32 to index
    %c0_49 = arith.constant 0 : index
    %c0_50 = arith.constant 0 : index
    %78 = vector.load %arg2[%77, %c0_49, %c0_50] : memref<4x32x72xbf16, #tpu.memory_space<vmem>>, vector<1x32x72xbf16>
    %79 = vector.shape_cast %78 : vector<1x32x72xbf16> to vector<32x72xbf16>
    %cst_51 = arith.constant dense<0.000000e+00> : vector<32x128xf32>
    %80 = tpu.matmul %79, %76, %cst_51 {dimension_numbers = #tpu.dot_dimension_numbers<[1], [0], [0], [1], [0, 0, 1, 1], [], []>} : vector<32x72xbf16>, vector<72x128xbf16>, vector<32x128xf32> -> vector<32x128xf32>
    %81 = arith.index_cast %c1_i32_32 : i32 to index
    %c0_52 = arith.constant 0 : index
    %c0_53 = arith.constant 0 : index
    %82 = vector.load %arg3[%81, %c0_52, %c0_53] : memref<4x32x1xf32, #tpu.memory_space<vmem>>, vector<1x32x1xf32>
    %83 = vector.shape_cast %82 : vector<1x32x1xf32> to vector<32x1xf32>
    %84 = vector.broadcast %83 : vector<32x1xf32> to vector<32x128xf32>
    %85 = arith.addf %80, %84 : vector<32x128xf32>
    %86 = vector.extract_strided_slice %85 {offsets = [0, 0], sizes = [24, 128], strides = [1, 1]} : vector<32x128xf32> to vector<24x128xf32>
    %cst_54 = arith.constant 0.000000e+00 : f32
    %87 = vector.broadcast %cst_54 : f32 to vector<24x128xf32>
    %88 = arith.subf %87, %86 : vector<24x128xf32>
    %89 = math.exp %88 : vector<24x128xf32>
    %cst_55 = arith.constant 1.000000e+00 : f32
    %90 = vector.broadcast %cst_55 : f32 to vector<24x128xf32>
    %91 = arith.addf %90, %89 : vector<24x128xf32>
    %92 = tpu.reciprocal %91 {approx = true} : vector<24x128xf32> -> vector<24x128xf32>
    %93 = vector.extract_strided_slice %85 {offsets = [24, 0], sizes = [8, 128], strides = [1, 1]} : vector<32x128xf32> to vector<8x128xf32>
    %94 = math.tanh %93 : vector<8x128xf32>
    %95 = vector.extract_strided_slice %92 {offsets = [0, 0], sizes = [8, 128], strides = [1, 1]} : vector<24x128xf32> to vector<8x128xf32>
    %96 = vector.extract_strided_slice %92 {offsets = [8, 0], sizes = [8, 128], strides = [1, 1]} : vector<24x128xf32> to vector<8x128xf32>
    %97 = vector.extract_strided_slice %92 {offsets = [16, 0], sizes = [8, 128], strides = [1, 1]} : vector<24x128xf32> to vector<8x128xf32>
    %c0_56 = arith.constant 0 : index
    %c0_57 = arith.constant 0 : index
    %98 = vector.load %arg6[%c0_56, %c0_57] : memref<8x128xf32, #tpu.memory_space<vmem>>, vector<8x128xf32>
    %99 = arith.mulf %95, %98 : vector<8x128xf32>
    %100 = arith.mulf %96, %94 : vector<8x128xf32>
    %101 = arith.addf %99, %100 : vector<8x128xf32>
    %c0_58 = arith.constant 0 : index
    %c0_59 = arith.constant 0 : index
    %102 = vector.load %arg6[%c0_58, %c0_59] : memref<8x128xf32, #tpu.memory_space<vmem>>, vector<8x128xf32>
    tpu.vector_store %arg6[%c0_58, %c0_59], %101 {strides = array<i32>} : memref<8x128xf32, #tpu.memory_space<vmem>>, vector<8x128xf32>,
    %103 = math.tanh %101 : vector<8x128xf32>
    %104 = arith.mulf %97, %103 : vector<8x128xf32>
    %c0_60 = arith.constant 0 : index
    %c0_61 = arith.constant 0 : index
    %c0_62 = arith.constant 0 : index
    %105 = vector.load %arg5[%c0_60, %c0_61, %c0_62] : memref<1x8x128xf32, #tpu.memory_space<vmem>>, vector<1x8x128xf32>
    %106 = vector.shape_cast %105 : vector<1x8x128xf32> to vector<8x128xf32>
    %107 = vector.shape_cast %104 : vector<8x128xf32> to vector<1x8x128xf32>
    tpu.vector_store %arg5[%c0_60, %c0_61, %c0_62], %107 {strides = array<i32>} : memref<1x8x128xf32, #tpu.memory_space<vmem>>, vector<1x8x128xf32>,
    %c2_i32 = arith.constant 2 : i32
    %c0_63 = arith.constant 0 : index
    %108 = arith.index_cast %c2_i32 : i32 to index
    %c0_64 = arith.constant 0 : index
    %c0_65 = arith.constant 0 : index
    %109 = vector.load %arg1[%c0_63, %108, %c0_64, %c0_65] : memref<1x4x8x128xbf16, #tpu.memory_space<vmem>>, vector<1x1x8x128xbf16>
    %110 = vector.shape_cast %109 : vector<1x1x8x128xbf16> to vector<8x128xbf16>
    %111 = arith.extf %110 : vector<8x128xbf16> to vector<8x128xf32>
    %c0_66 = arith.constant 0 : index
    %c0_67 = arith.constant 0 : index
    %c0_68 = arith.constant 0 : index
    %112 = vector.load %arg5[%c0_66, %c0_67, %c0_68] : memref<1x8x128xf32, #tpu.memory_space<vmem>>, vector<1x8x128xf32>
    %113 = vector.shape_cast %112 : vector<1x8x128xf32> to vector<8x128xf32>
    %c0_69 = arith.constant 0 : index
    %c0_70 = arith.constant 0 : index
    %114 = vector.load %arg6[%c0_69, %c0_70] : memref<8x128xf32, #tpu.memory_space<vmem>>, vector<8x128xf32>
    %115 = tpu.concatenate %111, %113, %114 in 0 : vector<8x128xf32>, vector<8x128xf32>, vector<8x128xf32> -> vector<24x128xf32>
    %c1_i32_71 = arith.constant 1 : i32
    %116 = tpu.dynamic_rotate %115 by %c1_i32_71 dim 1 : vector<24x128xf32>, i32 -> vector<24x128xf32>
    %c0_72 = arith.constant 0 : index
    %c0_73 = arith.constant 0 : index
    %c0_74 = arith.constant 0 : index
    %117 = vector.load %arg4[%c0_72, %c0_73, %c0_74] : memref<3x1x128xf32, #tpu.memory_space<vmem>>, vector<1x1x128xf32>
    %118 = vector.shape_cast %117 : vector<1x1x128xf32> to vector<1x128xf32>
    %119 = vector.broadcast %118 : vector<1x128xf32> to vector<24x128xf32>
    %120 = arith.mulf %116, %119 : vector<24x128xf32>
    %c127_i32_75 = arith.constant 127 : i32
    %121 = tpu.dynamic_rotate %115 by %c127_i32_75 dim 1 : vector<24x128xf32>, i32 -> vector<24x128xf32>
    %c2_76 = arith.constant 2 : index
    %c0_77 = arith.constant 0 : index
    %c0_78 = arith.constant 0 : index
    %122 = vector.load %arg4[%c2_76, %c0_77, %c0_78] : memref<3x1x128xf32, #tpu.memory_space<vmem>>, vector<1x1x128xf32>
    %123 = vector.shape_cast %122 : vector<1x1x128xf32> to vector<1x128xf32>
    %124 = vector.broadcast %123 : vector<1x128xf32> to vector<24x128xf32>
    %125 = arith.mulf %121, %124 : vector<24x128xf32>
    %126 = tpu.concatenate %120, %115, %125 in 0 : vector<24x128xf32>, vector<24x128xf32>, vector<24x128xf32> -> vector<72x128xf32>
    %127 = arith.truncf %126 : vector<72x128xf32> to vector<72x128xbf16>
    %128 = arith.index_cast %c2_i32 : i32 to index
    %c0_79 = arith.constant 0 : index
    %c0_80 = arith.constant 0 : index
    %129 = vector.load %arg2[%128, %c0_79, %c0_80] : memref<4x32x72xbf16, #tpu.memory_space<vmem>>, vector<1x32x72xbf16>
    %130 = vector.shape_cast %129 : vector<1x32x72xbf16> to vector<32x72xbf16>
    %cst_81 = arith.constant dense<0.000000e+00> : vector<32x128xf32>
    %131 = tpu.matmul %130, %127, %cst_81 {dimension_numbers = #tpu.dot_dimension_numbers<[1], [0], [0], [1], [0, 0, 1, 1], [], []>} : vector<32x72xbf16>, vector<72x128xbf16>, vector<32x128xf32> -> vector<32x128xf32>
    %132 = arith.index_cast %c2_i32 : i32 to index
    %c0_82 = arith.constant 0 : index
    %c0_83 = arith.constant 0 : index
    %133 = vector.load %arg3[%132, %c0_82, %c0_83] : memref<4x32x1xf32, #tpu.memory_space<vmem>>, vector<1x32x1xf32>
    %134 = vector.shape_cast %133 : vector<1x32x1xf32> to vector<32x1xf32>
    %135 = vector.broadcast %134 : vector<32x1xf32> to vector<32x128xf32>
    %136 = arith.addf %131, %135 : vector<32x128xf32>
    %137 = vector.extract_strided_slice %136 {offsets = [0, 0], sizes = [24, 128], strides = [1, 1]} : vector<32x128xf32> to vector<24x128xf32>
    %cst_84 = arith.constant 0.000000e+00 : f32
    %138 = vector.broadcast %cst_84 : f32 to vector<24x128xf32>
    %139 = arith.subf %138, %137 : vector<24x128xf32>
    %140 = math.exp %139 : vector<24x128xf32>
    %cst_85 = arith.constant 1.000000e+00 : f32
    %141 = vector.broadcast %cst_85 : f32 to vector<24x128xf32>
    %142 = arith.addf %141, %140 : vector<24x128xf32>
    %143 = tpu.reciprocal %142 {approx = true} : vector<24x128xf32> -> vector<24x128xf32>
    %144 = vector.extract_strided_slice %136 {offsets = [24, 0], sizes = [8, 128], strides = [1, 1]} : vector<32x128xf32> to vector<8x128xf32>
    %145 = math.tanh %144 : vector<8x128xf32>
    %146 = vector.extract_strided_slice %143 {offsets = [0, 0], sizes = [8, 128], strides = [1, 1]} : vector<24x128xf32> to vector<8x128xf32>
    %147 = vector.extract_strided_slice %143 {offsets = [8, 0], sizes = [8, 128], strides = [1, 1]} : vector<24x128xf32> to vector<8x128xf32>
    %148 = vector.extract_strided_slice %143 {offsets = [16, 0], sizes = [8, 128], strides = [1, 1]} : vector<24x128xf32> to vector<8x128xf32>
    %c0_86 = arith.constant 0 : index
    %c0_87 = arith.constant 0 : index
    %149 = vector.load %arg6[%c0_86, %c0_87] : memref<8x128xf32, #tpu.memory_space<vmem>>, vector<8x128xf32>
    %150 = arith.mulf %146, %149 : vector<8x128xf32>
    %151 = arith.mulf %147, %145 : vector<8x128xf32>
    %152 = arith.addf %150, %151 : vector<8x128xf32>
    %c0_88 = arith.constant 0 : index
    %c0_89 = arith.constant 0 : index
    %153 = vector.load %arg6[%c0_88, %c0_89] : memref<8x128xf32, #tpu.memory_space<vmem>>, vector<8x128xf32>
    tpu.vector_store %arg6[%c0_88, %c0_89], %152 {strides = array<i32>} : memref<8x128xf32, #tpu.memory_space<vmem>>, vector<8x128xf32>,
    %154 = math.tanh %152 : vector<8x128xf32>
    %155 = arith.mulf %148, %154 : vector<8x128xf32>
    %c0_90 = arith.constant 0 : index
    %c0_91 = arith.constant 0 : index
    %c0_92 = arith.constant 0 : index
    %156 = vector.load %arg5[%c0_90, %c0_91, %c0_92] : memref<1x8x128xf32, #tpu.memory_space<vmem>>, vector<1x8x128xf32>
    %157 = vector.shape_cast %156 : vector<1x8x128xf32> to vector<8x128xf32>
    %158 = vector.shape_cast %155 : vector<8x128xf32> to vector<1x8x128xf32>
    tpu.vector_store %arg5[%c0_90, %c0_91, %c0_92], %158 {strides = array<i32>} : memref<1x8x128xf32, #tpu.memory_space<vmem>>, vector<1x8x128xf32>,
    %c3_i32 = arith.constant 3 : i32
    %c0_93 = arith.constant 0 : index
    %159 = arith.index_cast %c3_i32 : i32 to index
    %c0_94 = arith.constant 0 : index
    %c0_95 = arith.constant 0 : index
    %160 = vector.load %arg1[%c0_93, %159, %c0_94, %c0_95] : memref<1x4x8x128xbf16, #tpu.memory_space<vmem>>, vector<1x1x8x128xbf16>
    %161 = vector.shape_cast %160 : vector<1x1x8x128xbf16> to vector<8x128xbf16>
    %162 = arith.extf %161 : vector<8x128xbf16> to vector<8x128xf32>
    %c0_96 = arith.constant 0 : index
    %c0_97 = arith.constant 0 : index
    %c0_98 = arith.constant 0 : index
    %163 = vector.load %arg5[%c0_96, %c0_97, %c0_98] : memref<1x8x128xf32, #tpu.memory_space<vmem>>, vector<1x8x128xf32>
    %164 = vector.shape_cast %163 : vector<1x8x128xf32> to vector<8x128xf32>
    %c0_99 = arith.constant 0 : index
    %c0_100 = arith.constant 0 : index
    %165 = vector.load %arg6[%c0_99, %c0_100] : memref<8x128xf32, #tpu.memory_space<vmem>>, vector<8x128xf32>
    %166 = tpu.concatenate %162, %164, %165 in 0 : vector<8x128xf32>, vector<8x128xf32>, vector<8x128xf32> -> vector<24x128xf32>
    %c1_i32_101 = arith.constant 1 : i32
    %167 = tpu.dynamic_rotate %166 by %c1_i32_101 dim 1 : vector<24x128xf32>, i32 -> vector<24x128xf32>
    %c0_102 = arith.constant 0 : index
    %c0_103 = arith.constant 0 : index
    %c0_104 = arith.constant 0 : index
    %168 = vector.load %arg4[%c0_102, %c0_103, %c0_104] : memref<3x1x128xf32, #tpu.memory_space<vmem>>, vector<1x1x128xf32>
    %169 = vector.shape_cast %168 : vector<1x1x128xf32> to vector<1x128xf32>
    %170 = vector.broadcast %169 : vector<1x128xf32> to vector<24x128xf32>
    %171 = arith.mulf %167, %170 : vector<24x128xf32>
    %c127_i32_105 = arith.constant 127 : i32
    %172 = tpu.dynamic_rotate %166 by %c127_i32_105 dim 1 : vector<24x128xf32>, i32 -> vector<24x128xf32>
    %c2_106 = arith.constant 2 : index
    %c0_107 = arith.constant 0 : index
    %c0_108 = arith.constant 0 : index
    %173 = vector.load %arg4[%c2_106, %c0_107, %c0_108] : memref<3x1x128xf32, #tpu.memory_space<vmem>>, vector<1x1x128xf32>
    %174 = vector.shape_cast %173 : vector<1x1x128xf32> to vector<1x128xf32>
    %175 = vector.broadcast %174 : vector<1x128xf32> to vector<24x128xf32>
    %176 = arith.mulf %172, %175 : vector<24x128xf32>
    %177 = tpu.concatenate %171, %166, %176 in 0 : vector<24x128xf32>, vector<24x128xf32>, vector<24x128xf32> -> vector<72x128xf32>
    %178 = arith.truncf %177 : vector<72x128xf32> to vector<72x128xbf16>
    %179 = arith.index_cast %c3_i32 : i32 to index
    %c0_109 = arith.constant 0 : index
    %c0_110 = arith.constant 0 : index
    %180 = vector.load %arg2[%179, %c0_109, %c0_110] : memref<4x32x72xbf16, #tpu.memory_space<vmem>>, vector<1x32x72xbf16>
    %181 = vector.shape_cast %180 : vector<1x32x72xbf16> to vector<32x72xbf16>
    %cst_111 = arith.constant dense<0.000000e+00> : vector<32x128xf32>
    %182 = tpu.matmul %181, %178, %cst_111 {dimension_numbers = #tpu.dot_dimension_numbers<[1], [0], [0], [1], [0, 0, 1, 1], [], []>} : vector<32x72xbf16>, vector<72x128xbf16>, vector<32x128xf32> -> vector<32x128xf32>
    %183 = arith.index_cast %c3_i32 : i32 to index
    %c0_112 = arith.constant 0 : index
    %c0_113 = arith.constant 0 : index
    %184 = vector.load %arg3[%183, %c0_112, %c0_113] : memref<4x32x1xf32, #tpu.memory_space<vmem>>, vector<1x32x1xf32>
    %185 = vector.shape_cast %184 : vector<1x32x1xf32> to vector<32x1xf32>
    %186 = vector.broadcast %185 : vector<32x1xf32> to vector<32x128xf32>
    %187 = arith.addf %182, %186 : vector<32x128xf32>
    %188 = vector.extract_strided_slice %187 {offsets = [0, 0], sizes = [24, 128], strides = [1, 1]} : vector<32x128xf32> to vector<24x128xf32>
    %cst_114 = arith.constant 0.000000e+00 : f32
    %189 = vector.broadcast %cst_114 : f32 to vector<24x128xf32>
    %190 = arith.subf %189, %188 : vector<24x128xf32>
    %191 = math.exp %190 : vector<24x128xf32>
    %cst_115 = arith.constant 1.000000e+00 : f32
    %192 = vector.broadcast %cst_115 : f32 to vector<24x128xf32>
    %193 = arith.addf %192, %191 : vector<24x128xf32>
    %194 = tpu.reciprocal %193 {approx = true} : vector<24x128xf32> -> vector<24x128xf32>
    %195 = vector.extract_strided_slice %187 {offsets = [24, 0], sizes = [8, 128], strides = [1, 1]} : vector<32x128xf32> to vector<8x128xf32>
    %196 = math.tanh %195 : vector<8x128xf32>
    %197 = vector.extract_strided_slice %194 {offsets = [0, 0], sizes = [8, 128], strides = [1, 1]} : vector<24x128xf32> to vector<8x128xf32>
    %198 = vector.extract_strided_slice %194 {offsets = [8, 0], sizes = [8, 128], strides = [1, 1]} : vector<24x128xf32> to vector<8x128xf32>
    %199 = vector.extract_strided_slice %194 {offsets = [16, 0], sizes = [8, 128], strides = [1, 1]} : vector<24x128xf32> to vector<8x128xf32>
    %c0_116 = arith.constant 0 : index
    %c0_117 = arith.constant 0 : index
    %200 = vector.load %arg6[%c0_116, %c0_117] : memref<8x128xf32, #tpu.memory_space<vmem>>, vector<8x128xf32>
    %201 = arith.mulf %197, %200 : vector<8x128xf32>
    %202 = arith.mulf %198, %196 : vector<8x128xf32>
    %203 = arith.addf %201, %202 : vector<8x128xf32>
    %c0_118 = arith.constant 0 : index
    %c0_119 = arith.constant 0 : index
    %204 = vector.load %arg6[%c0_118, %c0_119] : memref<8x128xf32, #tpu.memory_space<vmem>>, vector<8x128xf32>
    tpu.vector_store %arg6[%c0_118, %c0_119], %203 {strides = array<i32>} : memref<8x128xf32, #tpu.memory_space<vmem>>, vector<8x128xf32>,
    %205 = math.tanh %203 : vector<8x128xf32>
    %206 = arith.mulf %199, %205 : vector<8x128xf32>
    %c0_120 = arith.constant 0 : index
    %c0_121 = arith.constant 0 : index
    %c0_122 = arith.constant 0 : index
    %207 = vector.load %arg5[%c0_120, %c0_121, %c0_122] : memref<1x8x128xf32, #tpu.memory_space<vmem>>, vector<1x8x128xf32>
    %208 = vector.shape_cast %207 : vector<1x8x128xf32> to vector<8x128xf32>
    %209 = vector.shape_cast %206 : vector<8x128xf32> to vector<1x8x128xf32>
    tpu.vector_store %arg5[%c0_120, %c0_121, %c0_122], %209 {strides = array<i32>} : memref<1x8x128xf32, #tpu.memory_space<vmem>>, vector<1x8x128xf32>,
    %c4_i32 = arith.constant 4 : i32
    return
  }
  func.func @transform_0(%arg0: i32) -> (i32, i32, i32, i32) {
    %c0_i32 = arith.constant 0 : i32
    %c0_i32_0 = arith.constant 0 : i32
    %c0_i32_1 = arith.constant 0 : i32
    %c0_i32_2 = arith.constant 0 : i32
    return %arg0, %c0_i32, %c0_i32_0, %c0_i32_1 : i32, i32, i32, i32
  }
  func.func @transform_1(%arg0: i32) -> (i32, i32, i32) {
    %c0_i32 = arith.constant 0 : i32
    %c0_i32_0 = arith.constant 0 : i32
    %c0_i32_1 = arith.constant 0 : i32
    %c0_i32_2 = arith.constant 0 : i32
    return %c0_i32, %c0_i32_0, %c0_i32_1 : i32, i32, i32
  }
  func.func @transform_2(%arg0: i32) -> (i32, i32, i32) {
    %c0_i32 = arith.constant 0 : i32
    %c0_i32_0 = arith.constant 0 : i32
    %c0_i32_1 = arith.constant 0 : i32
    %c0_i32_2 = arith.constant 0 : i32
    return %c0_i32, %c0_i32_0, %c0_i32_1 : i32, i32, i32
  }
  func.func @transform_3(%arg0: i32) -> (i32, i32, i32) {
    %c0_i32 = arith.constant 0 : i32
    %c0_i32_0 = arith.constant 0 : i32
    %c0_i32_1 = arith.constant 0 : i32
    %c0_i32_2 = arith.constant 0 : i32
    return %c0_i32, %c0_i32_0, %c0_i32_1 : i32, i32, i32
  }
  func.func @transform_4(%arg0: i32) -> (i32, i32, i32) {
    %c0_i32 = arith.constant 0 : i32
    %c0_i32_0 = arith.constant 0 : i32
    %c0_i32_1 = arith.constant 0 : i32
    return %arg0, %c0_i32, %c0_i32_0 : i32, i32, i32
  }
}

</mosaic_0001>

<llo_original>
// kernel: _network_lstm_predict.1
$region0: #{_network_lstm_predict.1}
  #allocation0 [shape = 'u32[]', space=smem, size = 0x4, offset = 0x4, fixed_abs, tag = 'smem constant byte address 0x4 - core index']
  #allocation1 [shape = 'u32[144,128]{1,0:T(1,128)}', space=vmem, size = 0x12000, scoped, tag = 'internal scratch']
  #allocation2 [shape = 'f32[8,128]{1,0:T(8,128)}', space=vmem, size = 0x1000, scoped, tag = 'scratch operand']
  %s0 = inlined_call_operand.vmem [shape: bf16[2,4,8,128], index: 0, kind: input, shape index: {}]
  %s1 = inlined_call_operand.vmem [shape: bf16[4,32,72], index: 1, kind: input, shape index: {}]
  %s2 = inlined_call_operand.vmem [shape: f32[4,32,1], index: 2, kind: input, shape index: {}]
  %s3 = inlined_call_operand.vmem [shape: f32[3,1,128], index: 3, kind: input, shape index: {}]
  %s4 = inlined_call_operand.hbm [shape: f32[2,8,128], index: 4, kind: output, shape index: {}]
  %s5 = sld [smem:[#allocation0]]
  $region49: #{_network_lstm_predict.1} parent=0
    _
  %s7 = ssub.s32 1, %s5
  %s8 = scalar_select 0, %s7, %s5
  $region1: #{_network_lstm_predict.1} parent=0
    #allocation3 [shape = 'u8[8192]{0}', space=vmem, size = 0x2000, scoped, tag = 'output window, operand 0']
    #allocation4 [shape = 's32[2]{0}', space=sflag, size = 0x8, scoped, tag = 'scoped memory for _network_lstm_predict.1']
    %9 = vsyncpa [#allocation4], 0
    %s10 = scalar_lea.sflag [#allocation4], 1
    %11 = vsyncpa %s10, 0
    loop: start=0, step=1, limit=4
    $region2: #{_network_lstm_predict.1} parent=1 // loop_pre_header
      _
    $region3: #{_network_lstm_predict.1} parent=1 // loop_header
      %s13 = sphi 0, %s17
      %p14 = scmp.ge.s32.totalorder %s13, 4
      %s23 = sphi 0, %s25
      %s26 = sphi 0, %s23
      %s27 = sphi 0, %s26
      %s43 = sphi 0, %s27
      %s47 = sphi 0, %s47
      %s49 = sphi 0, %s47
      %s50 = sphi 0, %s49
      %s64 = sphi 0, %s50
      %s68 = sphi 0, %s68
      %s70 = sphi 0, %s68
      %s71 = sphi 0, %s70
      %s85 = sphi 0, %s71
      %s89 = sphi 0, %s89
      %s91 = sphi 0, %s89
      %s92 = sphi 0, %s91
      %s106 = sphi 0, %s92
      %s112 = sphi 0, %s114
      %s115 = sphi 0, %s112
      %s116 = sphi 0, %s115
      %s132 = sphi 0, %s116
    $region4: #{_network_lstm_predict.1} parent=1 // loop_header_branch
      %16 = sbr.rel (%p14) target = $region8
    $region5: #{_network_lstm_predict.1} parent=1 // loop_body
      %s18 = ssub.s32 %s13, 1
      %s19 = ssub.s32 %s13, 2
      %s20 = sadd.s32 %s13, 1
      %s21 = ssub.s32 %s13, %s20
      %p22 = scmp.eq.s32.totalorder %s21, 0
      %s24 = sadd.s32 %s23, 1
      %s25 = scalar_select %p22, %s23, %s24
      %p28 = pneg %p22
      %p29 = scmp.eq.s32.totalorder %s13, 1
      %p30 = por %p28, %p29
      %p31 = scmp.ne.s32.totalorder %s23, %s26
      %p32 = scmp.eq.s32.totalorder %s13, 0
      %p33 = por %p31, %p32
      %p34 = scmp.ne.s32.totalorder %s23, %s26
      %p35 = scmp.eq.s32.totalorder %s18, 1
      %p36 = por %p34, %p35
      %p37 = scmp.ne.s32.totalorder %s26, %s27
      %p38 = scmp.eq.s32.totalorder %s18, 0
      %p39 = por %p37, %p38
      %p40 = scmp.ne.s32.totalorder %s26, %s27
      %p41 = scmp.eq.s32.totalorder %s19, 1
      %p42 = por %p40, %p41
      %p44 = scmp.ne.s32.totalorder %s27, %s43
      %p45 = scmp.eq.s32.totalorder %s19, 0
      %p46 = por %p44, %p45
      %s48 = sadd.s32 %s47, 1
      %p51 = scmp.eq.s32.totalorder %s13, 1
      %p52 = scmp.ne.s32.totalorder %s47, %s49
      %p53 = scmp.eq.s32.totalorder %s13, 0
      %p54 = por %p52, %p53
      %p55 = scmp.ne.s32.totalorder %s47, %s49
      %p56 = scmp.eq.s32.totalorder %s18, 1
      %p57 = por %p55, %p56
      %p58 = scmp.ne.s32.totalorder %s49, %s50
      %p59 = scmp.eq.s32.totalorder %s18, 0
      %p60 = por %p58, %p59
      %p61 = scmp.ne.s32.totalorder %s49, %s50
      %p62 = scmp.eq.s32.totalorder %s19, 1
      %p63 = por %p61, %p62
      %p65 = scmp.ne.s32.totalorder %s50, %s64
      %p66 = scmp.eq.s32.totalorder %s19, 0
      %p67 = por %p65, %p66
      %s69 = sadd.s32 %s68, 1
      %p72 = scmp.eq.s32.totalorder %s13, 1
      %p73 = scmp.ne.s32.totalorder %s68, %s70
      %p74 = scmp.eq.s32.totalorder %s13, 0
      %p75 = por %p73, %p74
      %p76 = scmp.ne.s32.totalorder %s68, %s70
      %p77 = scmp.eq.s32.totalorder %s18, 1
      %p78 = por %p76, %p77
      %p79 = scmp.ne.s32.totalorder %s70, %s71
      %p80 = scmp.eq.s32.totalorder %s18, 0
      %p81 = por %p79, %p80
      %p82 = scmp.ne.s32.totalorder %s70, %s71
      %p83 = scmp.eq.s32.totalorder %s19, 1
      %p84 = por %p82, %p83
      %p86 = scmp.ne.s32.totalorder %s71, %s85
      %p87 = scmp.eq.s32.totalorder %s19, 0
      %p88 = por %p86, %p87
      %s90 = sadd.s32 %s89, 1
      %p93 = scmp.eq.s32.totalorder %s13, 1
      %p94 = scmp.ne.s32.totalorder %s89, %s91
      %p95 = scmp.eq.s32.totalorder %s13, 0
      %p96 = por %p94, %p95
      %p97 = scmp.ne.s32.totalorder %s89, %s91
      %p98 = scmp.eq.s32.totalorder %s18, 1
      %p99 = por %p97, %p98
      %p100 = scmp.ne.s32.totalorder %s91, %s92
      %p101 = scmp.eq.s32.totalorder %s18, 0
      %p102 = por %p100, %p101
      %p103 = scmp.ne.s32.totalorder %s91, %s92
      %p104 = scmp.eq.s32.totalorder %s19, 1
      %p105 = por %p103, %p104
      %p107 = scmp.ne.s32.totalorder %s92, %s106
      %p108 = scmp.eq.s32.totalorder %s19, 0
      %p109 = por %p107, %p108
      %s110 = ssub.s32 %s13, %s20
      %p111 = scmp.eq.s32.totalorder %s110, 0
      %s113 = sadd.s32 %s112, 1
      %s114 = scalar_select %p111, %s112, %s113
      %p117 = pneg %p111
      %p118 = scmp.eq.s32.totalorder %s13, 1
      %p119 = por %p117, %p118
      %p120 = scmp.ne.s32.totalorder %s112, %s115
      %p121 = scmp.eq.s32.totalorder %s13, 0
      %p122 = por %p120, %p121
      %p123 = scmp.ne.s32.totalorder %s112, %s115
      %p124 = scmp.eq.s32.totalorder %s18, 1
      %p125 = por %p123, %p124
      %p126 = scmp.ne.s32.totalorder %s115, %s116
      %p127 = scmp.eq.s32.totalorder %s18, 0
      %p128 = por %p126, %p127
      %p129 = scmp.ne.s32.totalorder %s115, %s116
      %p130 = scmp.eq.s32.totalorder %s19, 1
      %p131 = por %p129, %p130
      %p133 = scmp.ne.s32.totalorder %s116, %s132
      %p134 = scmp.eq.s32.totalorder %s19, 0
      %p135 = por %p133, %p134
      %p136 = scmp.le.s32.totalorder 1, %s13
      %p137 = scmp.lt.s32.totalorder %s13, 3
      %p138 = pnand %p136, %p137
      %p139 = pneg %p138
      // Predicated region
      $region9: #{_network_lstm_predict.1} parent=5 // pred_check
        _
      $region10: #{_network_lstm_predict.1} parent=5 // pred_check_branch
        %141 = sbr.rel (%p138) target = $region12
      $region11: #{_network_lstm_predict.1} parent=5 // pred_region
        %s142 = ssub.s32 %s13, 1
        // Predicated region
        $region13: #{_network_lstm_predict.1} parent=11 // pred_check
          %p143 = pneg %p60
        $region14: #{_network_lstm_predict.1} parent=11 // pred_check_branch
          %145 = sbr.rel (%p143) target = $region16
        $region15: #{_network_lstm_predict.1} parent=11 // pred_region
          _
        $region16: #{_network_lstm_predict.1} parent=11 // pred_fallthru
          _
        // Predicated region
        $region17: #{_network_lstm_predict.1} parent=11 // pred_check
          %p146 = pneg %p81
        $region18: #{_network_lstm_predict.1} parent=11 // pred_check_branch
          %148 = sbr.rel (%p146) target = $region20
        $region19: #{_network_lstm_predict.1} parent=11 // pred_region
          _
        $region20: #{_network_lstm_predict.1} parent=11 // pred_fallthru
          _
        // Predicated region
        $region21: #{_network_lstm_predict.1} parent=11 // pred_check
          %p149 = pneg %p102
        $region22: #{_network_lstm_predict.1} parent=11 // pred_check_branch
          %151 = sbr.rel (%p149) target = $region24
        $region23: #{_network_lstm_predict.1} parent=11 // pred_region
          _
        $region24: #{_network_lstm_predict.1} parent=11 // pred_fallthru
          _
      $region12: #{_network_lstm_predict.1} parent=5 // pred_fallthru
        _
      %p152 = scmp.lt.s32.totalorder %s13, 2
      // Predicated region
      $region25: #{_network_lstm_predict.1} parent=5 // pred_check
        %p153 = pneg %p152
      $region26: #{_network_lstm_predict.1} parent=5 // pred_check_branch
        %155 = sbr.rel (%p153) target = $region28
      $region27: #{_network_lstm_predict.1} parent=5 // pred_region
        // Predicated region
        $region29: #{_network_lstm_predict.1} parent=27 // pred_check
          %p156 = pneg %p33
        $region30: #{_network_lstm_predict.1} parent=27 // pred_check_branch
          %158 = sbr.rel (%p156) target = $region32
        $region31: #{_network_lstm_predict.1} parent=27 // pred_region
          %p159 = scmp.lt.s32.totalorder %s13, 1
          %s160 = scalar_select %p159, %s13, 1
          %s161 = smul.addr %s160, 4
          %s162 = smul.addr %s161, 4
          %s163 = scalar_lea.vmem %s0, %s162
        $region32: #{_network_lstm_predict.1} parent=27 // pred_fallthru
          _
      $region28: #{_network_lstm_predict.1} parent=5 // pred_fallthru
        _
      %p164 = scmp.le.s32.totalorder 1, %s13
      %p165 = scmp.lt.s32.totalorder %s13, 3
      %p166 = pnand %p164, %p165
      %p167 = pneg %p166
      // Predicated region
      $region33: #{_network_lstm_predict.1} parent=5 // pred_check
        _
      $region34: #{_network_lstm_predict.1} parent=5 // pred_check_branch
        %169 = sbr.rel (%p166) target = $region36
      $region35: #{_network_lstm_predict.1} parent=5 // pred_region
        %s170 = ssub.s32 %s13, 1
        %p171 = scmp.lt.s32.totalorder %s18, 1
        %s172 = scalar_select %p171, %s18, 1
        %s173 = smul.addr %s172, 4
        %s174 = smul.addr %s173, 4
        %s175 = scalar_lea.vmem %s0, %s174
        %p176 = pneg %p39
        %p177 = pneg %p36
        %p178 = pneg %p60
        %p179 = pneg %p57
        %p180 = pneg %p81
        %p181 = pneg %p78
        %p182 = pneg %p102
        %p183 = pneg %p99
        %p184 = pneg %p128
        %p185 = pneg %p125
        %s186 = sand.u32 %s115, 1
        %s187 = scalar_lea.sflag [#allocation4], %s186
        %s188 = sand.u32 %s115, 1
        %s189 = smul.addr %s188, 8
        %s190 = scalar_lea.vmem [#allocation3], %s189
        %p191 = scmp.lt.s32.totalorder %s18, 1
        %s192 = scalar_select %p191, %s18, 1
        %s193 = smul.addr %s192, 4
        %s194 = smul.addr %s193, 4
        %s195 = scalar_lea.vmem %s0, %s194
        %197 = vst [vmem:[%s190] sm:$0xff] 0.0
        %198 = vst [vmem:[#allocation2] sm:$0xff] 0.0
        %v199 = vld [vmem:[%s195] sm:$0xf]
        %v200 = vunpack.c.l.bf16 %v199
        %v201 = vld [vmem:[%s190] sm:$0xff]
        %v202 = vld [vmem:[#allocation2] sm:$0xff]
        %203 = vrot.lane.b32.xlu0 %v200, 1
        %v204 = vpop.permute.xlu0 %203
        %205 = vrot.lane.b32.xlu0 %v201, 1
        %v206 = vpop.permute.xlu0 %205
        %207 = vrot.lane.b32.xlu0 %v202, 1
        %v208 = vpop.permute.xlu0 %207
        %v209 = vld [vmem:[%s3] sm:$0x1]
        %v211 = vlaneseq
        %v212 = vshrl.u32 %v211, 7
        %v213 = vsub.s32 0, %v212
        %v214 = vrot.slane %v209, %v213
        %v216 = vmul.f32 %v204, %v214
        %v217 = vmul.f32 %v206, %v214
        %v218 = vmul.f32 %v208, %v214
        %219 = vrot.lane.b32.xlu0 %v200, 127
        %v220 = vpop.permute.xlu0 %219
        %221 = vrot.lane.b32.xlu0 %v201, 127
        %v222 = vpop.permute.xlu0 %221
        %223 = vrot.lane.b32.xlu0 %v202, 127
        %v224 = vpop.permute.xlu0 %223
        %s225 = scalar_lea.vmem %s3, 2
        %v226 = vld [vmem:[%s225] sm:$0x1]
        %v228 = vlaneseq
        %v229 = vshrl.u32 %v228, 7
        %v230 = vsub.s32 0, %v229
        %v231 = vrot.slane %v226, %v230
        %v233 = vmul.f32 %v220, %v231
        %v234 = vmul.f32 %v222, %v231
        %v235 = vmul.f32 %v224, %v231
        %v236 = vpack.c.bf16 %v217, %v216
        %v237 = vpack.c.bf16 %v200, %v218
        %v238 = vpack.c.bf16 %v202, %v201
        %v239 = vpack.c.bf16 %v234, %v233
        %v240 = vpack.c.bf16 %v235, %v235
        %v241 = vld [vmem:[%s1] sm:$0xf]
        %v242 = vld [vmem:[%s1 + $0x4] sm:$0xf]
        %v243 = vld [vmem:[%s1 + $0x8] sm:$0xf]
        %v244 = vld [vmem:[%s1 + $0xc] sm:$0xf]
        %v245 = vld [vmem:[%s2] sm:$0xff]
        %v246 = vld [vmem:[%s2 + $0x8] sm:$0xff]
        %v247 = vld [vmem:[%s2 + $0x10] sm:$0xff]
        %v248 = vld [vmem:[%s2 + $0x18] sm:$0xff]
        %250 = vset.pattern.permute.xlu0 0
        %251 = vperm.xlu0 %250, %v245
        %v252 = vpop.permute.xlu0 %251
        %255 = vset.pattern.permute.xlu0 0
        %256 = vperm.xlu0 %255, %v246
        %v257 = vpop.permute.xlu0 %256
        %260 = vset.pattern.permute.xlu0 0
        %261 = vperm.xlu0 %260, %v247
        %v262 = vpop.permute.xlu0 %261
        %265 = vset.pattern.permute.xlu0 0
        %266 = vperm.xlu0 %265, %v248
        %v267 = vpop.permute.xlu0 %266
        %v273 = vunpack.c.l.b16 %v241
        %v274 = vunpack.c.l.b16 %v242
        %v275 = vunpack.c.l.b16 %v243
        %v276 = vunpack.c.l.b16 %v244
        %v277 = vpack.c.b16 %v274, %v273
        %v278 = vpack.c.b16 %v276, %v275
        %vm279 = vcmask 588800
        %v281 = vsel %vm279, %v277, 0
        %v284 = vsel %vm279, %v278, 0
        %vm286 = vcmask 1043456
        %v288 = vsel %vm286, %v240, 0
        %290 = vmatprep.subr.bf16.mxu0 0
        %291 = vmatpush1.bf16.msra.mxu0 %v236
        %292 = vmatprep.subr.bf16.mxu0 0
        %293 = vmatpush1.bf16.msra.mxu0 %v237
        %294 = vmatprep.subr.bf16.mxu0 0
        %295 = vmatpush1.bf16.msra.mxu0 %v238
        %296 = vmatprep.subr.bf16.mxu0 0
        %297 = vmatpush1.bf16.msra.mxu0 %v239
        %298 = vmatprep.subr.bf16.mxu0 0
        %299 = vmatpush1.bf16.msra.mxu0 %v288
        %300 = vmatprep.subr.bf16.mxu0 0
        %301 = vmatpush1.bf16.msra.mxu0 0
        %302 = vmatprep.subr.bf16.mxu0 0
        %303 = vmatpush1.bf16.msra.mxu0 0
        %304 = vmatprep.subr.bf16.mxu0 0
        %305 = vmatpush1.bf16.msra.mxu0 0
        %306 = vmatprep.subr.bf16.mxu0 0
        %307 = vmatpush1.bf16.msra.mxu0 0
        %308 = vmatprep.subr.bf16.mxu0 0
        %309 = vmatpush1.bf16.msra.mxu0 0
        %310 = vmatprep.subr.bf16.mxu0 0
        %311 = vmatpush1.bf16.msra.mxu0 0
        %312 = vmatprep.subr.bf16.mxu0 0
        %313 = vmatpush1.bf16.msra.mxu0 0
        %314 = vmatprep.subr.bf16.mxu0 0
        %315 = vmatpush1.bf16.msra.mxu0 0
        %316 = vmatprep.subr.bf16.mxu0 0
        %317 = vmatpush1.bf16.msra.mxu0 0
        %318 = vmatprep.subr.bf16.mxu0 0
        %319 = vmatpush1.bf16.msra.mxu0 0
        %320 = vmatprep.subr.bf16.mxu0 0
        %321 = vmatpush1.bf16.msra.mxu0 0
        %322 = vmatprep.mubr.bf16.mxu0 0
        %323 = vmatmul.mubr.bf16.gmra.mrb[0].mxu0 %v281
        %v324 = vpop.f32.mrb[0].mxu0
        %v325 = vadd.f32 %v252, %v324
        %v326 = vpop.f32.mrb[0].mxu0
        %v327 = vpop.f32.mrb[0].mxu0
        %v328 = vadd.f32 %v257, %v327
        %v329 = vpop.f32.mrb[0].mxu0
        %330 = vmatprep.mubr.bf16.mxu0 0
        %331 = vmatmul.mubr.bf16.gmra.mrb[0].mxu0 %v284
        %v332 = vpop.f32.mrb[0].mxu0
        %v333 = vadd.f32 %v262, %v332
        %v334 = vpop.f32.mrb[0].mxu0
        %v335 = vpop.f32.mrb[0].mxu0
        %v336 = vadd.f32 %v267, %v335
        %v337 = vpop.f32.mrb[0].mxu0
        %338 = vdwg.mxu0
        %v339 = vsub.f32 0.0, %v325
        %v340 = vsub.f32 0.0, %v328
        %v341 = vsub.f32 0.0, %v333
        %v342 = vmul.f32 %v339, 1.442695
        %v343 = vpow.pop %v342
        %v344 = vmul.f32 %v340, 1.442695
        %v345 = vpow.pop %v344
        %v346 = vmul.f32 %v341, 1.442695
        %v347 = vpow.pop %v346
        %v348 = vadd.f32 %v343, 1.0
        %v349 = vadd.f32 %v345, 1.0
        %v350 = vadd.f32 %v347, 1.0
        %v351 = vrcp.pop %v348
        %v352 = vrcp.pop %v349
        %v353 = vrcp.pop %v350
        %v354 = vtanh.pop %v336
        %v355 = vmul.f32 %v351, %v202
        %v356 = vmul.f32 %v352, %v354
        %v357 = vadd.f32 %v355, %v356
        %358 = vst [vmem:[#allocation2] sm:$0xff] %v357
        %v359 = vtanh.pop %v357
        %v360 = vmul.f32 %v353, %v359
        %361 = vst [vmem:[%s190] sm:$0xff] %v360
        %s362 = scalar_lea.vmem %s195, 4
        %v363 = vld [vmem:[%s362] sm:$0xf]
        %v364 = vunpack.c.l.bf16 %v363
        %v365 = vld [vmem:[%s190] sm:$0xff]
        %v366 = vld [vmem:[#allocation2] sm:$0xff]
        %367 = vrot.lane.b32.xlu0 %v364, 1
        %v368 = vpop.permute.xlu0 %367
        %369 = vrot.lane.b32.xlu0 %v365, 1
        %v370 = vpop.permute.xlu0 %369
        %371 = vrot.lane.b32.xlu0 %v366, 1
        %v372 = vpop.permute.xlu0 %371
        %v373 = vld [vmem:[%s3] sm:$0x1]
        %v375 = vlaneseq
        %v376 = vshrl.u32 %v375, 7
        %v377 = vsub.s32 0, %v376
        %v378 = vrot.slane %v373, %v377
        %v380 = vmul.f32 %v368, %v378
        %v381 = vmul.f32 %v370, %v378
        %v382 = vmul.f32 %v372, %v378
        %383 = vrot.lane.b32.xlu0 %v364, 127
        %v384 = vpop.permute.xlu0 %383
        %385 = vrot.lane.b32.xlu0 %v365, 127
        %v386 = vpop.permute.xlu0 %385
        %387 = vrot.lane.b32.xlu0 %v366, 127
        %v388 = vpop.permute.xlu0 %387
        %v389 = vld [vmem:[%s225] sm:$0x1]
        %v391 = vlaneseq
        %v392 = vshrl.u32 %v391, 7
        %v393 = vsub.s32 0, %v392
        %v394 = vrot.slane %v389, %v393
        %v396 = vmul.f32 %v384, %v394
        %v397 = vmul.f32 %v386, %v394
        %v398 = vmul.f32 %v388, %v394
        %v399 = vpack.c.bf16 %v381, %v380
        %v400 = vpack.c.bf16 %v364, %v382
        %v401 = vpack.c.bf16 %v366, %v365
        %v402 = vpack.c.bf16 %v397, %v396
        %v403 = vpack.c.bf16 %v398, %v398
        %s404 = scalar_lea.vmem %s1, 16
        %v405 = vld [vmem:[%s404] sm:$0xf]
        %v406 = vld [vmem:[%s404 + $0x4] sm:$0xf]
        %v407 = vld [vmem:[%s404 + $0x8] sm:$0xf]
        %v408 = vld [vmem:[%s404 + $0xc] sm:$0xf]
        %s409 = scalar_lea.vmem %s2, 32
        %v410 = vld [vmem:[%s409] sm:$0xff]
        %v411 = vld [vmem:[%s409 + $0x8] sm:$0xff]
        %v412 = vld [vmem:[%s409 + $0x10] sm:$0xff]
        %v413 = vld [vmem:[%s409 + $0x18] sm:$0xff]
        %415 = vset.pattern.permute.xlu0 0
        %416 = vperm.xlu0 %415, %v410
        %v417 = vpop.permute.xlu0 %416
        %420 = vset.pattern.permute.xlu0 0
        %421 = vperm.xlu0 %420, %v411
        %v422 = vpop.permute.xlu0 %421
        %425 = vset.pattern.permute.xlu0 0
        %426 = vperm.xlu0 %425, %v412
        %v427 = vpop.permute.xlu0 %426
        %430 = vset.pattern.permute.xlu0 0
        %431 = vperm.xlu0 %430, %v413
        %v432 = vpop.permute.xlu0 %431
        %v438 = vunpack.c.l.b16 %v405
        %v439 = vunpack.c.l.b16 %v406
        %v440 = vunpack.c.l.b16 %v407
        %v441 = vunpack.c.l.b16 %v408
        %v442 = vpack.c.b16 %v439, %v438
        %v443 = vpack.c.b16 %v441, %v440
        %v445 = vsel %vm279, %v442, 0
        %v448 = vsel %vm279, %v443, 0
        %v451 = vsel %vm286, %v403, 0
        %453 = vmatprep.subr.bf16.mxu0 0
        %454 = vmatpush1.bf16.msra.mxu0 %v399
        %455 = vmatprep.subr.bf16.mxu0 0
        %456 = vmatpush1.bf16.msra.mxu0 %v400
        %457 = vmatprep.subr.bf16.mxu0 0
        %458 = vmatpush1.bf16.msra.mxu0 %v401
        %459 = vmatprep.subr.bf16.mxu0 0
        %460 = vmatpush1.bf16.msra.mxu0 %v402
        %461 = vmatprep.subr.bf16.mxu0 0
        %462 = vmatpush1.bf16.msra.mxu0 %v451
        %463 = vmatprep.subr.bf16.mxu0 0
        %464 = vmatpush1.bf16.msra.mxu0 0
        %465 = vmatprep.subr.bf16.mxu0 0
        %466 = vmatpush1.bf16.msra.mxu0 0
        %467 = vmatprep.subr.bf16.mxu0 0
        %468 = vmatpush1.bf16.msra.mxu0 0
        %469 = vmatprep.subr.bf16.mxu0 0
        %470 = vmatpush1.bf16.msra.mxu0 0
        %471 = vmatprep.subr.bf16.mxu0 0
        %472 = vmatpush1.bf16.msra.mxu0 0
        %473 = vmatprep.subr.bf16.mxu0 0
        %474 = vmatpush1.bf16.msra.mxu0 0
        %475 = vmatprep.subr.bf16.mxu0 0
        %476 = vmatpush1.bf16.msra.mxu0 0
        %477 = vmatprep.subr.bf16.mxu0 0
        %478 = vmatpush1.bf16.msra.mxu0 0
        %479 = vmatprep.subr.bf16.mxu0 0
        %480 = vmatpush1.bf16.msra.mxu0 0
        %481 = vmatprep.subr.bf16.mxu0 0
        %482 = vmatpush1.bf16.msra.mxu0 0
        %483 = vmatprep.subr.bf16.mxu0 0
        %484 = vmatpush1.bf16.msra.mxu0 0
        %485 = vmatprep.mubr.bf16.mxu0 0
        %486 = vmatmul.mubr.bf16.gmra.mrb[0].mxu0 %v445
        %v487 = vpop.f32.mrb[0].mxu0
        %v488 = vadd.f32 %v417, %v487
        %v489 = vpop.f32.mrb[0].mxu0
        %v490 = vpop.f32.mrb[0].mxu0
        %v491 = vadd.f32 %v422, %v490
        %v492 = vpop.f32.mrb[0].mxu0
        %493 = vmatprep.mubr.bf16.mxu0 0
        %494 = vmatmul.mubr.bf16.gmra.mrb[0].mxu0 %v448
        %v495 = vpop.f32.mrb[0].mxu0
        %v496 = vadd.f32 %v427, %v495
        %v497 = vpop.f32.mrb[0].mxu0
        %v498 = vpop.f32.mrb[0].mxu0
        %v499 = vadd.f32 %v432, %v498
        %v500 = vpop.f32.mrb[0].mxu0
        %501 = vdwg.mxu0
        %v502 = vsub.f32 0.0, %v488
        %v503 = vsub.f32 0.0, %v491
        %v504 = vsub.f32 0.0, %v496
        %v505 = vmul.f32 %v502, 1.442695
        %v506 = vpow.pop %v505
        %v507 = vmul.f32 %v503, 1.442695
        %v508 = vpow.pop %v507
        %v509 = vmul.f32 %v504, 1.442695
        %v510 = vpow.pop %v509
        %v511 = vadd.f32 %v506, 1.0
        %v512 = vadd.f32 %v508, 1.0
        %v513 = vadd.f32 %v510, 1.0
        %v514 = vrcp.pop %v511
        %v515 = vrcp.pop %v512
        %v516 = vrcp.pop %v513
        %v517 = vtanh.pop %v499
        %v518 = vmul.f32 %v514, %v366
        %v519 = vmul.f32 %v515, %v517
        %v520 = vadd.f32 %v518, %v519
        %521 = vst [vmem:[#allocation2] sm:$0xff] %v520
        %v522 = vtanh.pop %v520
        %v523 = vmul.f32 %v516, %v522
        %524 = vst [vmem:[%s190] sm:$0xff] %v523
        %s525 = scalar_lea.vmem %s195, 8
        %v526 = vld [vmem:[%s525] sm:$0xf]
        %v527 = vunpack.c.l.bf16 %v526
        %v528 = vld [vmem:[%s190] sm:$0xff]
        %v529 = vld [vmem:[#allocation2] sm:$0xff]
        %530 = vrot.lane.b32.xlu0 %v527, 1
        %v531 = vpop.permute.xlu0 %530
        %532 = vrot.lane.b32.xlu0 %v528, 1
        %v533 = vpop.permute.xlu0 %532
        %534 = vrot.lane.b32.xlu0 %v529, 1
        %v535 = vpop.permute.xlu0 %534
        %v536 = vld [vmem:[%s3] sm:$0x1]
        %v538 = vlaneseq
        %v539 = vshrl.u32 %v538, 7
        %v540 = vsub.s32 0, %v539
        %v541 = vrot.slane %v536, %v540
        %v543 = vmul.f32 %v531, %v541
        %v544 = vmul.f32 %v533, %v541
        %v545 = vmul.f32 %v535, %v541
        %546 = vrot.lane.b32.xlu0 %v527, 127
        %v547 = vpop.permute.xlu0 %546
        %548 = vrot.lane.b32.xlu0 %v528, 127
        %v549 = vpop.permute.xlu0 %548
        %550 = vrot.lane.b32.xlu0 %v529, 127
        %v551 = vpop.permute.xlu0 %550
        %v552 = vld [vmem:[%s225] sm:$0x1]
        %v554 = vlaneseq
        %v555 = vshrl.u32 %v554, 7
        %v556 = vsub.s32 0, %v555
        %v557 = vrot.slane %v552, %v556
        %v559 = vmul.f32 %v547, %v557
        %v560 = vmul.f32 %v549, %v557
        %v561 = vmul.f32 %v551, %v557
        %v562 = vpack.c.bf16 %v544, %v543
        %v563 = vpack.c.bf16 %v527, %v545
        %v564 = vpack.c.bf16 %v529, %v528
        %v565 = vpack.c.bf16 %v560, %v559
        %v566 = vpack.c.bf16 %v561, %v561
        %s567 = scalar_lea.vmem %s1, 32
        %v568 = vld [vmem:[%s567] sm:$0xf]
        %v569 = vld [vmem:[%s567 + $0x4] sm:$0xf]
        %v570 = vld [vmem:[%s567 + $0x8] sm:$0xf]
        %v571 = vld [vmem:[%s567 + $0xc] sm:$0xf]
        %s572 = scalar_lea.vmem %s2, 64
        %v573 = vld [vmem:[%s572] sm:$0xff]
        %v574 = vld [vmem:[%s572 + $0x8] sm:$0xff]
        %v575 = vld [vmem:[%s572 + $0x10] sm:$0xff]
        %v576 = vld [vmem:[%s572 + $0x18] sm:$0xff]
        %578 = vset.pattern.permute.xlu0 0
        %579 = vperm.xlu0 %578, %v573
        %v580 = vpop.permute.xlu0 %579
        %583 = vset.pattern.permute.xlu0 0
        %584 = vperm.xlu0 %583, %v574
        %v585 = vpop.permute.xlu0 %584
        %588 = vset.pattern.permute.xlu0 0
        %589 = vperm.xlu0 %588, %v575
        %v590 = vpop.permute.xlu0 %589
        %593 = vset.pattern.permute.xlu0 0
        %594 = vperm.xlu0 %593, %v576
        %v595 = vpop.permute.xlu0 %594
        %v601 = vunpack.c.l.b16 %v568
        %v602 = vunpack.c.l.b16 %v569
        %v603 = vunpack.c.l.b16 %v570
        %v604 = vunpack.c.l.b16 %v571
        %v605 = vpack.c.b16 %v602, %v601
        %v606 = vpack.c.b16 %v604, %v603
        %v608 = vsel %vm279, %v605, 0
        %v611 = vsel %vm279, %v606, 0
        %v614 = vsel %vm286, %v566, 0
        %616 = vmatprep.subr.bf16.mxu0 0
        %617 = vmatpush1.bf16.msra.mxu0 %v562
        %618 = vmatprep.subr.bf16.mxu0 0
        %619 = vmatpush1.bf16.msra.mxu0 %v563
        %620 = vmatprep.subr.bf16.mxu0 0
        %621 = vmatpush1.bf16.msra.mxu0 %v564
        %622 = vmatprep.subr.bf16.mxu0 0
        %623 = vmatpush1.bf16.msra.mxu0 %v565
        %624 = vmatprep.subr.bf16.mxu0 0
        %625 = vmatpush1.bf16.msra.mxu0 %v614
        %626 = vmatprep.subr.bf16.mxu0 0
        %627 = vmatpush1.bf16.msra.mxu0 0
        %628 = vmatprep.subr.bf16.mxu0 0
        %629 = vmatpush1.bf16.msra.mxu0 0
        %630 = vmatprep.subr.bf16.mxu0 0
        %631 = vmatpush1.bf16.msra.mxu0 0
        %632 = vmatprep.subr.bf16.mxu0 0
        %633 = vmatpush1.bf16.msra.mxu0 0
        %634 = vmatprep.subr.bf16.mxu0 0
        %635 = vmatpush1.bf16.msra.mxu0 0
        %636 = vmatprep.subr.bf16.mxu0 0
        %637 = vmatpush1.bf16.msra.mxu0 0
        %638 = vmatprep.subr.bf16.mxu0 0
        %639 = vmatpush1.bf16.msra.mxu0 0
        %640 = vmatprep.subr.bf16.mxu0 0
        %641 = vmatpush1.bf16.msra.mxu0 0
        %642 = vmatprep.subr.bf16.mxu0 0
        %643 = vmatpush1.bf16.msra.mxu0 0
        %644 = vmatprep.subr.bf16.mxu0 0
        %645 = vmatpush1.bf16.msra.mxu0 0
        %646 = vmatprep.subr.bf16.mxu0 0
        %647 = vmatpush1.bf16.msra.mxu0 0
        %648 = vmatprep.mubr.bf16.mxu0 0
        %649 = vmatmul.mubr.bf16.gmra.mrb[0].mxu0 %v608
        %v650 = vpop.f32.mrb[0].mxu0
        %v651 = vadd.f32 %v580, %v650
        %v652 = vpop.f32.mrb[0].mxu0
        %v653 = vpop.f32.mrb[0].mxu0
        %v654 = vadd.f32 %v585, %v653
        %v655 = vpop.f32.mrb[0].mxu0
        %656 = vmatprep.mubr.bf16.mxu0 0
        %657 = vmatmul.mubr.bf16.gmra.mrb[0].mxu0 %v611
        %v658 = vpop.f32.mrb[0].mxu0
        %v659 = vadd.f32 %v590, %v658
        %v660 = vpop.f32.mrb[0].mxu0
        %v661 = vpop.f32.mrb[0].mxu0
        %v662 = vadd.f32 %v595, %v661
        %v663 = vpop.f32.mrb[0].mxu0
        %664 = vdwg.mxu0
        %v665 = vsub.f32 0.0, %v651
        %v666 = vsub.f32 0.0, %v654
        %v667 = vsub.f32 0.0, %v659
        %v668 = vmul.f32 %v665, 1.442695
        %v669 = vpow.pop %v668
        %v670 = vmul.f32 %v666, 1.442695
        %v671 = vpow.pop %v670
        %v672 = vmul.f32 %v667, 1.442695
        %v673 = vpow.pop %v672
        %v674 = vadd.f32 %v669, 1.0
        %v675 = vadd.f32 %v671, 1.0
        %v676 = vadd.f32 %v673, 1.0
        %v677 = vrcp.pop %v674
        %v678 = vrcp.pop %v675
        %v679 = vrcp.pop %v676
        %v680 = vtanh.pop %v662
        %v681 = vmul.f32 %v677, %v529
        %v682 = vmul.f32 %v678, %v680
        %v683 = vadd.f32 %v681, %v682
        %684 = vst [vmem:[#allocation2] sm:$0xff] %v683
        %v685 = vtanh.pop %v683
        %v686 = vmul.f32 %v679, %v685
        %687 = vst [vmem:[%s190] sm:$0xff] %v686
        %s688 = scalar_lea.vmem %s195, 12
        %v689 = vld [vmem:[%s688] sm:$0xf]
        %v690 = vunpack.c.l.bf16 %v689
        %v691 = vld [vmem:[%s190] sm:$0xff]
        %v692 = vld [vmem:[#allocation2] sm:$0xff]
        %693 = vrot.lane.b32.xlu0 %v690, 1
        %v694 = vpop.permute.xlu0 %693
        %695 = vrot.lane.b32.xlu0 %v691, 1
        %v696 = vpop.permute.xlu0 %695
        %697 = vrot.lane.b32.xlu0 %v692, 1
        %v698 = vpop.permute.xlu0 %697
        %v699 = vld [vmem:[%s3] sm:$0x1]
        %v701 = vlaneseq
        %v702 = vshrl.u32 %v701, 7
        %v703 = vsub.s32 0, %v702
        %v704 = vrot.slane %v699, %v703
        %v706 = vmul.f32 %v694, %v704
        %v707 = vmul.f32 %v696, %v704
        %v708 = vmul.f32 %v698, %v704
        %709 = vrot.lane.b32.xlu0 %v690, 127
        %v710 = vpop.permute.xlu0 %709
        %711 = vrot.lane.b32.xlu0 %v691, 127
        %v712 = vpop.permute.xlu0 %711
        %713 = vrot.lane.b32.xlu0 %v692, 127
        %v714 = vpop.permute.xlu0 %713
        %v715 = vld [vmem:[%s225] sm:$0x1]
        %v717 = vlaneseq
        %v718 = vshrl.u32 %v717, 7
        %v719 = vsub.s32 0, %v718
        %v720 = vrot.slane %v715, %v719
        %v722 = vmul.f32 %v710, %v720
        %v723 = vmul.f32 %v712, %v720
        %v724 = vmul.f32 %v714, %v720
        %v725 = vpack.c.bf16 %v707, %v706
        %v726 = vpack.c.bf16 %v690, %v708
        %v727 = vpack.c.bf16 %v692, %v691
        %v728 = vpack.c.bf16 %v723, %v722
        %v729 = vpack.c.bf16 %v724, %v724
        %s730 = scalar_lea.vmem %s1, 48
        %v731 = vld [vmem:[%s730] sm:$0xf]
        %v732 = vld [vmem:[%s730 + $0x4] sm:$0xf]
        %v733 = vld [vmem:[%s730 + $0x8] sm:$0xf]
        %v734 = vld [vmem:[%s730 + $0xc] sm:$0xf]
        %s735 = scalar_lea.vmem %s2, 96
        %v736 = vld [vmem:[%s735] sm:$0xff]
        %v737 = vld [vmem:[%s735 + $0x8] sm:$0xff]
        %v738 = vld [vmem:[%s735 + $0x10] sm:$0xff]
        %v739 = vld [vmem:[%s735 + $0x18] sm:$0xff]
        %741 = vset.pattern.permute.xlu0 0
        %742 = vperm.xlu0 %741, %v736
        %v743 = vpop.permute.xlu0 %742
        %746 = vset.pattern.permute.xlu0 0
        %747 = vperm.xlu0 %746, %v737
        %v748 = vpop.permute.xlu0 %747
        %751 = vset.pattern.permute.xlu0 0
        %752 = vperm.xlu0 %751, %v738
        %v753 = vpop.permute.xlu0 %752
        %756 = vset.pattern.permute.xlu0 0
        %757 = vperm.xlu0 %756, %v739
        %v758 = vpop.permute.xlu0 %757
        %v764 = vunpack.c.l.b16 %v731
        %v765 = vunpack.c.l.b16 %v732
        %v766 = vunpack.c.l.b16 %v733
        %v767 = vunpack.c.l.b16 %v734
        %v768 = vpack.c.b16 %v765, %v764
        %v769 = vpack.c.b16 %v767, %v766
        %v771 = vsel %vm279, %v768, 0
        %v774 = vsel %vm279, %v769, 0
        %v777 = vsel %vm286, %v729, 0
        %779 = vmatprep.subr.bf16.mxu0 0
        %780 = vmatpush1.bf16.msra.mxu0 %v725
        %781 = vmatprep.subr.bf16.mxu0 0
        %782 = vmatpush1.bf16.msra.mxu0 %v726
        %783 = vmatprep.subr.bf16.mxu0 0
        %784 = vmatpush1.bf16.msra.mxu0 %v727
        %785 = vmatprep.subr.bf16.mxu0 0
        %786 = vmatpush1.bf16.msra.mxu0 %v728
        %787 = vmatprep.subr.bf16.mxu0 0
        %788 = vmatpush1.bf16.msra.mxu0 %v777
        %789 = vmatprep.subr.bf16.mxu0 0
        %790 = vmatpush1.bf16.msra.mxu0 0
        %791 = vmatprep.subr.bf16.mxu0 0
        %792 = vmatpush1.bf16.msra.mxu0 0
        %793 = vmatprep.subr.bf16.mxu0 0
        %794 = vmatpush1.bf16.msra.mxu0 0
        %795 = vmatprep.subr.bf16.mxu0 0
        %796 = vmatpush1.bf16.msra.mxu0 0
        %797 = vmatprep.subr.bf16.mxu0 0
        %798 = vmatpush1.bf16.msra.mxu0 0
        %799 = vmatprep.subr.bf16.mxu0 0
        %800 = vmatpush1.bf16.msra.mxu0 0
        %801 = vmatprep.subr.bf16.mxu0 0
        %802 = vmatpush1.bf16.msra.mxu0 0
        %803 = vmatprep.subr.bf16.mxu0 0
        %804 = vmatpush1.bf16.msra.mxu0 0
        %805 = vmatprep.subr.bf16.mxu0 0
        %806 = vmatpush1.bf16.msra.mxu0 0
        %807 = vmatprep.subr.bf16.mxu0 0
        %808 = vmatpush1.bf16.msra.mxu0 0
        %809 = vmatprep.subr.bf16.mxu0 0
        %810 = vmatpush1.bf16.msra.mxu0 0
        %811 = vmatprep.mubr.bf16.mxu0 0
        %812 = vmatmul.mubr.bf16.gmra.mrb[0].mxu0 %v771
        %v813 = vpop.f32.mrb[0].mxu0
        %v814 = vadd.f32 %v743, %v813
        %v815 = vpop.f32.mrb[0].mxu0
        %v816 = vpop.f32.mrb[0].mxu0
        %v817 = vadd.f32 %v748, %v816
        %v818 = vpop.f32.mrb[0].mxu0
        %819 = vmatprep.mubr.bf16.mxu0 0
        %820 = vmatmul.mubr.bf16.gmra.mrb[0].mxu0 %v774
        %v821 = vpop.f32.mrb[0].mxu0
        %v822 = vadd.f32 %v753, %v821
        %v823 = vpop.f32.mrb[0].mxu0
        %v824 = vpop.f32.mrb[0].mxu0
        %v825 = vadd.f32 %v758, %v824
        %v826 = vpop.f32.mrb[0].mxu0
        %827 = vdwg.mxu0
        %v828 = vsub.f32 0.0, %v814
        %v829 = vsub.f32 0.0, %v817
        %v830 = vsub.f32 0.0, %v822
        %v831 = vmul.f32 %v828, 1.442695
        %v832 = vpow.pop %v831
        %v833 = vmul.f32 %v829, 1.442695
        %v834 = vpow.pop %v833
        %v835 = vmul.f32 %v830, 1.442695
        %v836 = vpow.pop %v835
        %v837 = vadd.f32 %v832, 1.0
        %v838 = vadd.f32 %v834, 1.0
        %v839 = vadd.f32 %v836, 1.0
        %v840 = vrcp.pop %v837
        %v841 = vrcp.pop %v838
        %v842 = vrcp.pop %v839
        %v843 = vtanh.pop %v825
        %v844 = vmul.f32 %v840, %v692
        %v845 = vmul.f32 %v841, %v843
        %v846 = vadd.f32 %v844, %v845
        %847 = vst [vmem:[#allocation2] sm:$0xff] %v846
        %v848 = vtanh.pop %v846
        %v849 = vmul.f32 %v842, %v848
        %850 = vst [vmem:[%s190] sm:$0xff] %v849
        %s851 = sand.u32 %s115, 1
        %s852 = scalar_lea.sflag [#allocation4], %s851
        %s853 = sand.u32 %s115, 1
        %s854 = smul.addr %s853, 8
        %s855 = scalar_lea.vmem [#allocation3], %s854
        // Predicated region
        $region37: #{_network_lstm_predict.1} parent=35 // pred_check
          %p856 = pneg %p125
        $region38: #{_network_lstm_predict.1} parent=35 // pred_check_branch
          %858 = sbr.rel (%p856) target = $region40
        $region39: #{_network_lstm_predict.1} parent=35 // pred_region
          %s860 = ssub.s32 128, 128
          %861 = vsyncadd %s852, %s860
          %s862 = smul.addr %s18, 128
          %s863 = scalar_lea.hbm %s4, %s862
          %s865 = sshll.u32 %s855, 4
          %s866 = int_to_ptr.vmem [resolvable:$true] %s865
          %868 = dma.vmem_to_hbm [thread:$0]  %s866, 128, %s863, %s852
        $region40: #{_network_lstm_predict.1} parent=35 // pred_fallthru
          _
      $region36: #{_network_lstm_predict.1} parent=5 // pred_fallthru
        _
      %p869 = scmp.le.s32.totalorder 2, %s13
      // Predicated region
      $region41: #{_network_lstm_predict.1} parent=5 // pred_check
        %p870 = pneg %p869
      $region42: #{_network_lstm_predict.1} parent=5 // pred_check_branch
        %872 = sbr.rel (%p870) target = $region44
      $region43: #{_network_lstm_predict.1} parent=5 // pred_region
        %s873 = ssub.s32 %s13, 2
        // Predicated region
        $region45: #{_network_lstm_predict.1} parent=43 // pred_check
          %p874 = pneg %p131
        $region46: #{_network_lstm_predict.1} parent=43 // pred_check_branch
          %876 = sbr.rel (%p874) target = $region48
        $region47: #{_network_lstm_predict.1} parent=43 // pred_region
          %s877 = sand.u32 %s116, 1
          %s878 = scalar_lea.sflag [#allocation4], %s877
          %s879 = sand.u32 %s116, 1
          %s880 = smul.addr %s879, 8
          %s881 = scalar_lea.vmem [#allocation3], %s880
          %882 = dma.done %s878, 128
        $region48: #{_network_lstm_predict.1} parent=43 // pred_fallthru
          _
      $region44: #{_network_lstm_predict.1} parent=5 // pred_fallthru
        _
    $region6: #{_network_lstm_predict.1} parent=1 // loop_footer
      %s17 = sadd.s32 1, %s13
    $region7: #{_network_lstm_predict.1} parent=1 // loop_footer_branch
      %12 = sbr.rel target = $region3
    $region8: #{_network_lstm_predict.1} parent=1 // loop_exit
      _
    %883 = vsyncpa [#allocation4], 1
    %s884 = scalar_lea.sflag [#allocation4], 1
    %885 = vsyncpa %s884, 1

</llo_original>
